<compile_context>
chip_gen: v7x
topology: tpu7x:2x2x1
jax: 0.10.0
libtpu: 0.0.40
codegen_flags: <defaults>
</compile_context>

<pallas_src>
import math
import numpy as np
import jax
import jax.numpy as jnp
from jax.experimental import pallas as pl
from jax.experimental.pallas import tpu as pltpu


# ----------------------------- Pallas kernel --------------------------------

def _fused_deconv_kernel(x_ref, w_ref, b_ref, o_ref):
    # x_ref: (tR*W, Cin)            activations (bf16 or f32)
    # w_ref: (kH, Cin, kW*Cout)     weight-normalized kernel, columns ordered (kw, cout)
    # b_ref: (1, kW*Cout)           bias tiled over kw, f32
    # o_ref: (tR, kH, W, kW*Cout)   final (interleaved, cropped) output block
    tR, kH, W, NC = o_ref.shape
    x = x_ref[...]                              # (tR*W, Cin)
    bias = b_ref[...]                           # (1, NC) f32
    for kh in range(kH):                        # static unroll (kH == 2)
        acc = jnp.dot(x, w_ref[kh], preferred_element_type=jnp.float32)  # (tR*W, NC)
        acc = acc + bias
        # rows are (h, w)-ordered, lanes are (kw, cout)-ordered -> this reshape keeps the
        # lane dim intact and the store lands at output rows 2h+kh (memory-exact interleave)
        o_ref[:, kh, :, :] = acc.reshape(tR, W, NC).astype(o_ref.dtype)


def _pick_row_tile(rows, w, target_m=1024):
    """Pick tR (output rows per block, tR | rows) so the matmul tile tR*W is large
    (~target_m rows), 8-aligned on the sublane dim, and the grid has >=2 steps
    (v7x megacore) when possible."""
    divs = [d for d in range(1, rows + 1) if rows % d == 0]

    def ok(d, need_grid2, need_align):
        if d * w > max(target_m, w):
            return False
        if need_align and (d * w) % 8 != 0 and d != rows:
            return False
        if need_grid2 and rows // d < 2:
            return False
        return True

    for need_grid2, need_align in ((True, True), (False, True), (False, False)):
        cand = [d for d in divs if ok(d, need_grid2, need_align)]
        if cand:
            tR = max(cand)
            break
    else:
        tR = 1
    # BlockSpec constraint fallback: second-to-last dim of x block must be 8-aligned or full.
    if (tR * w) % 8 != 0 and tR != rows:
        tR = rows
    return tR


# ------------------------------ JAX wrapper ----------------------------------

def _weight_norm(v, g):
    # PyTorch wn default dim=0 on ConvTranspose2d weight (Cin, Cout, kH, kW):
    # norm over dims (1, 2, 3), one scalar per input channel.
    norm = jnp.sqrt(jnp.sum(v * v, axis=(1, 2, 3), keepdims=True))
    return g * v / norm


def down_right_shifted_deconv2d_fwd(
    x_nchw, v, g, b, filter_size=(2, 2), stride=(2, 2), output_padding=1,
    *, compute_dtype=jnp.bfloat16, target_m_rows=1024,
):
    N, Cin, H, W = x_nchw.shape
    kH, kW = filter_size
    sH, sW = stride
    Cout = v.shape[1]

    # Fused interleave path is exact only for the PixelCNN++ configuration.
    # TODO(synk): general stride < filter_size would need an overlapping scatter-add path.
    assert (sH, sW) == (kH, kW), "fused path requires stride == filter_size"
    assert output_padding == sH - 1 == sW - 1, "fused path requires output_padding == stride-1"

    # Weight norm in f32, then lay the kernel out as (kH, Cin, kW*Cout) with columns
    # ordered (kw, cout) so the matmul result is already in final memory order.
    w = _weight_norm(v.astype(jnp.float32), g.astype(jnp.float32))          # (Cin,Cout,kH,kW)
    w_k = jnp.transpose(w, (2, 0, 3, 1)).reshape(kH, Cin, kW * Cout)
    w_k = w_k.astype(compute_dtype)
    b2 = jnp.tile(b.astype(jnp.float32), (kW,)).reshape(1, kW * Cout)       # (1, kW*Cout)

    # NCHW -> NHWC (boundary transpose; fused with the bf16 cast by XLA), then a free
    # row-major reshape to the matmul M axis.  No padding copy of the activations.
    x_nhwc = jnp.transpose(x_nchw, (0, 2, 3, 1))
    x2 = x_nhwc.reshape(N * H * W, Cin).astype(compute_dtype)

    R = N * H                       # output-row blocks (image rows, may span images)
    NC = kW * Cout
    tR = _pick_row_tile(R, W, target_m=target_m_rows)
    tM = tR * W
    grid = (R // tR,)

    out = pl.pallas_call(
        _fused_deconv_kernel,
        out_shape=jax.ShapeDtypeStruct((R, kH, W, NC), x_nchw.dtype),
        grid=grid,
        in_specs=[
            pl.BlockSpec((tM, Cin), lambda i: (i, 0)),
            pl.BlockSpec((kH, Cin, NC), lambda i: (0, 0, 0)),
            pl.BlockSpec((1, NC), lambda i: (0, 0)),
        ],
        out_specs=pl.BlockSpec((tR, kH, W, NC), lambda i: (i, 0, 0, 0)),
        compiler_params=pltpu.CompilerParams(
            dimension_semantics=("parallel",),
            vmem_limit_bytes=32 * 1024 * 1024,
        ),
    )(x2, w_k, b2)

    # (N*H, kH, W, kW*Cout) is bit-identical to NHWC (N, kH*H, kW*W, Cout): free reshape.
    y_nhwc = out.reshape(N, kH * H, kW * W, Cout)
    # Boundary transpose back to the module's NCHW contract.
    return jnp.transpose(y_nhwc, (0, 3, 1, 2))


# --------------------------- NumPy reference (check) --------------------------

def _ref_forward(x, v, g, b, filter_size, stride, output_padding):
    x = np.asarray(x, np.float64)
    v = np.asarray(v, np.float64)
    g = np.asarray(g, np.float64)
    b = np.asarray(b, np.float64)
    norm = np.sqrt(np.sum(v * v, axis=(1, 2, 3), keepdims=True))
    w = g * v / norm
    N, Cin, H, W = x.shape
    Cout = v.shape[1]
    kH, kW = filter_size
    sH, sW = stride
    Hf = (H - 1) * sH + kH + output_padding
    Wf = (W - 1) * sW + kW + output_padding
    y = np.zeros((N, Cout, Hf, Wf), np.float64)
    for kh in range(kH):
        for kw in range(kW):
            contrib = np.einsum("nihw,io->nohw", x, w[:, :, kh, kw])
            y[:, :, kh: kh + (H - 1) * sH + 1: sH,
                    kw: kw + (W - 1) * sW + 1: sW] += contrib
    y = y + b[None, :, None, None]
    return y[:, :, : Hf - kH + 1, : Wf - kW + 1]


# ----------------------------------- main -------------------------------------

if __name__ == "__main__":
    # NOTE: the module's default stride=(1,1) with output_padding=1 is rejected by PyTorch
    # at runtime (output_padding must be < stride); use the PixelCNN++ config stride=(2,2).
    N, Cin, Cout, H, W = 2, 4, 4, 8, 8
    filter_size, stride, output_padding = (2, 2), (2, 2), 1

    key = jax.random.PRNGKey(0)
    k_x, k_v, k_b = jax.random.split(key, 3)

    x = jax.random.normal(k_x, (N, Cin, H, W), dtype=jnp.float32)
    v = 0.05 * jax.random.normal(k_v, (Cin, Cout, *filter_size), dtype=jnp.float32)
    g = jnp.sqrt(jnp.sum(v * v, axis=(1, 2, 3), keepdims=True))   # wn init: w == v
    fan_in = Cout * filter_size[0] * filter_size[1]
    bound = 1.0 / math.sqrt(fan_in)
    b = jax.random.uniform(k_b, (Cout,), minval=-bound, maxval=bound, dtype=jnp.float32)

    ref = _ref_forward(x, v, g, b, filter_size, stride, output_padding)

    # (1) exactness of the fused algorithm: f32 MXU operands, tight tolerance.
    out_f32 = down_right_shifted_deconv2d_fwd(
        x, v, g, b, filter_size=filter_size, stride=stride,
        output_padding=output_padding, compute_dtype=jnp.float32)
    out_f32 = jax.block_until_ready(out_f32)
    assert out_f32.shape == ref.shape, (out_f32.shape, ref.shape)
    np.testing.assert_allclose(np.asarray(out_f32), ref, rtol=1e-5, atol=1e-5)

    # (2) default fast path: bf16 MXU operands, f32 accumulation (bf16-appropriate tol).
    out = down_right_shifted_deconv2d_fwd(
        x, v, g, b, filter_size=filter_size, stride=stride,
        output_padding=output_padding)
    out = jax.block_until_ready(out)
    assert out.shape == ref.shape, (out.shape, ref.shape)
    np.testing.assert_allclose(np.asarray(out), ref, rtol=2e-2, atol=2e-2)

    print("KERNEL_OK")
</pallas_src>

<mosaic_0001>
module attributes {stable_mosaic.version = 11 : i64} {
  func.func @_fused_deconv_kernel(%arg0: i32, %arg1: memref<64x4xf32, #tpu.memory_space<vmem>>, %arg2: memref<2x4x8xf32, #tpu.memory_space<vmem>>, %arg3: memref<1x8xf32, #tpu.memory_space<vmem>>, %arg4: memref<8x2x8x8xf32, #tpu.memory_space<vmem>>) attributes {dimension_semantics = [#tpu.dimension_semantics<parallel>], iteration_bounds = array<i64: 2>, scalar_prefetch = 0 : i64, scratch_operands = 0 : i64, tpu.core_type = #tpu.core_type<tc>, window_params = [{transform_indices = @transform_0, window_bounds = array<i64: 64, 4>}, {pipeline_mode = #tpu.pipeline_mode<synchronous>, transform_indices = @transform_1, window_bounds = array<i64: 2, 4, 8>}, {pipeline_mode = #tpu.pipeline_mode<synchronous>, transform_indices = @transform_2, window_bounds = array<i64: 1, 8>}, {transform_indices = @transform_3, window_bounds = array<i64: 8, 2, 8, 8>}]} {
    %c0 = arith.constant 0 : index
    %c0_0 = arith.constant 0 : index
    %0 = vector.load %arg1[%c0, %c0_0] : memref<64x4xf32, #tpu.memory_space<vmem>>, vector<64x4xf32>
    %c0_1 = arith.constant 0 : index
    %c0_2 = arith.constant 0 : index
    %1 = vector.load %arg3[%c0_1, %c0_2] : memref<1x8xf32, #tpu.memory_space<vmem>>, vector<1x8xf32>
    %c0_3 = arith.constant 0 : index
    %c0_4 = arith.constant 0 : index
    %c0_5 = arith.constant 0 : index
    %2 = vector.load %arg2[%c0_3, %c0_4, %c0_5] : memref<2x4x8xf32, #tpu.memory_space<vmem>>, vector<1x4x8xf32>
    %3 = vector.shape_cast %2 : vector<1x4x8xf32> to vector<4x8xf32>
    %cst = arith.constant dense<0.000000e+00> : vector<64x8xf32>
    %4 = tpu.matmul %0, %3, %cst {dimension_numbers = #tpu.dot_dimension_numbers<[1], [0], [0], [1], [0, 0, 1, 1], [], []>} : vector<64x4xf32>, vector<4x8xf32>, vector<64x8xf32> -> vector<64x8xf32>
    %5 = vector.broadcast %1 : vector<1x8xf32> to vector<64x8xf32>
    %6 = arith.addf %4, %5 : vector<64x8xf32>
    %7 = vector.shape_cast %6 : vector<64x8xf32> to vector<8x8x8xf32>
    %c0_6 = arith.constant 0 : index
    %c0_7 = arith.constant 0 : index
    %c0_8 = arith.constant 0 : index
    %c0_9 = arith.constant 0 : index
    %8 = vector.load %arg4[%c0_6, %c0_7, %c0_8, %c0_9] : memref<8x2x8x8xf32, #tpu.memory_space<vmem>>, vector<8x1x8x8xf32>
    %9 = vector.shape_cast %8 : vector<8x1x8x8xf32> to vector<8x8x8xf32>
    %10 = vector.shape_cast %7 : vector<8x8x8xf32> to vector<8x1x8x8xf32>
    tpu.vector_store %arg4[%c0_6, %c0_7, %c0_8, %c0_9], %10 {strides = array<i32>} : memref<8x2x8x8xf32, #tpu.memory_space<vmem>>, vector<8x1x8x8xf32>,
    %c1 = arith.constant 1 : index
    %c0_10 = arith.constant 0 : index
    %c0_11 = arith.constant 0 : index
    %11 = vector.load %arg2[%c1, %c0_10, %c0_11] : memref<2x4x8xf32, #tpu.memory_space<vmem>>, vector<1x4x8xf32>
    %12 = vector.shape_cast %11 : vector<1x4x8xf32> to vector<4x8xf32>
    %cst_12 = arith.constant dense<0.000000e+00> : vector<64x8xf32>
    %13 = tpu.matmul %0, %12, %cst_12 {dimension_numbers = #tpu.dot_dimension_numbers<[1], [0], [0], [1], [0, 0, 1, 1], [], []>} : vector<64x4xf32>, vector<4x8xf32>, vector<64x8xf32> -> vector<64x8xf32>
    %14 = vector.broadcast %1 : vector<1x8xf32> to vector<64x8xf32>
    %15 = arith.addf %13, %14 : vector<64x8xf32>
    %16 = vector.shape_cast %15 : vector<64x8xf32> to vector<8x8x8xf32>
    %c0_13 = arith.constant 0 : index
    %c1_14 = arith.constant 1 : index
    %c0_15 = arith.constant 0 : index
    %c0_16 = arith.constant 0 : index
    %17 = vector.load %arg4[%c0_13, %c1_14, %c0_15, %c0_16] : memref<8x2x8x8xf32, #tpu.memory_space<vmem>>, vector<8x1x8x8xf32>
    %18 = vector.shape_cast %17 : vector<8x1x8x8xf32> to vector<8x8x8xf32>
    %19 = vector.shape_cast %16 : vector<8x8x8xf32> to vector<8x1x8x8xf32>
    tpu.vector_store %arg4[%c0_13, %c1_14, %c0_15, %c0_16], %19 {strides = array<i32>} : memref<8x2x8x8xf32, #tpu.memory_space<vmem>>, vector<8x1x8x8xf32>,
    return
  }
  func.func @transform_0(%arg0: i32) -> (i32, i32) {
    %c0_i32 = arith.constant 0 : i32
    %c0_i32_0 = arith.constant 0 : i32
    return %arg0, %c0_i32 : i32, i32
  }
  func.func @transform_1(%arg0: i32) -> (i32, i32, i32) {
    %c0_i32 = arith.constant 0 : i32
    %c0_i32_0 = arith.constant 0 : i32
    %c0_i32_1 = arith.constant 0 : i32
    %c0_i32_2 = arith.constant 0 : i32
    return %c0_i32, %c0_i32_0, %c0_i32_1 : i32, i32, i32
  }
  func.func @transform_2(%arg0: i32) -> (i32, i32) {
    %c0_i32 = arith.constant 0 : i32
    %c0_i32_0 = arith.constant 0 : i32
    %c0_i32_1 = arith.constant 0 : i32
    return %c0_i32, %c0_i32_0 : i32, i32
  }
  func.func @transform_3(%arg0: i32) -> (i32, i32, i32, i32) {
    %c0_i32 = arith.constant 0 : i32
    %c0_i32_0 = arith.constant 0 : i32
    %c0_i32_1 = arith.constant 0 : i32
    %c0_i32_2 = arith.constant 0 : i32
    return %arg0, %c0_i32, %c0_i32_0, %c0_i32_1 : i32, i32, i32, i32
  }
}

</mosaic_0001>

<llo_original>
// kernel: tpu_custom_call.1
$region0: #{tpu_custom_call.1}
  #allocation0 [shape = 'u32[]', space=smem, size = 0x4, offset = 0x4, fixed_abs, tag = 'smem constant byte address 0x4 - core index']
  #allocation1 [shape = 'u32[144,128]{1,0:T(1,128)}', space=vmem, size = 0x12000, scoped, tag = 'internal scratch']
  %s0 = inlined_call_operand.vmem [shape: f32[128,4], index: 0, kind: input, shape index: {}]
  %s1 = inlined_call_operand.vmem [shape: f32[2,4,8], index: 1, kind: input, shape index: {}]
  %s2 = inlined_call_operand.vmem [shape: f32[1,8], index: 2, kind: input, shape index: {}]
  %s3 = inlined_call_operand.vmem [shape: f32[16,2,8,8], index: 3, kind: output, shape index: {}]
  %s4 = sld [smem:[#allocation0]]
  $region45: #{tpu_custom_call.1} parent=0
    _
  %s6 = ssub.s32 1, %s4
  %s7 = scalar_select 0, %s6, %s4
  loop: start=0, step=1, limit=4
  $region2: #{tpu_custom_call.1} parent=0 // loop_pre_header
    _
  $region3: #{tpu_custom_call.1} parent=0 // loop_header
    %s9 = sphi 0, %s13
    %p10 = scmp.ge.s32.totalorder %s9, 4
    %s19 = sphi 0, %s21
    %s22 = sphi 0, %s19
    %s23 = sphi 0, %s22
    %s39 = sphi 0, %s23
    %s43 = sphi 0, %s43
    %s45 = sphi 0, %s43
    %s46 = sphi 0, %s45
    %s60 = sphi 0, %s46
    %s64 = sphi 0, %s64
    %s66 = sphi 0, %s64
    %s67 = sphi 0, %s66
    %s81 = sphi 0, %s67
    %s87 = sphi 0, %s89
    %s90 = sphi 0, %s87
    %s91 = sphi 0, %s90
    %s107 = sphi 0, %s91
  $region4: #{tpu_custom_call.1} parent=0 // loop_header_branch
    %12 = sbr.rel (%p10) target = $region8
  $region5: #{tpu_custom_call.1} parent=0 // loop_body
    %s14 = ssub.s32 %s9, 1
    %s15 = ssub.s32 %s9, 2
    %s16 = sadd.s32 %s9, 1
    %s17 = ssub.s32 %s9, %s16
    %p18 = scmp.eq.s32.totalorder %s17, 0
    %s20 = sadd.s32 %s19, 1
    %s21 = scalar_select %p18, %s19, %s20
    %p24 = pneg %p18
    %p25 = scmp.eq.s32.totalorder %s9, 1
    %p26 = por %p24, %p25
    %p27 = scmp.ne.s32.totalorder %s19, %s22
    %p28 = scmp.eq.s32.totalorder %s9, 0
    %p29 = por %p27, %p28
    %p30 = scmp.ne.s32.totalorder %s19, %s22
    %p31 = scmp.eq.s32.totalorder %s14, 1
    %p32 = por %p30, %p31
    %p33 = scmp.ne.s32.totalorder %s22, %s23
    %p34 = scmp.eq.s32.totalorder %s14, 0
    %p35 = por %p33, %p34
    %p36 = scmp.ne.s32.totalorder %s22, %s23
    %p37 = scmp.eq.s32.totalorder %s15, 1
    %p38 = por %p36, %p37
    %p40 = scmp.ne.s32.totalorder %s23, %s39
    %p41 = scmp.eq.s32.totalorder %s15, 0
    %p42 = por %p40, %p41
    %s44 = sadd.s32 %s43, 1
    %p47 = scmp.eq.s32.totalorder %s9, 1
    %p48 = scmp.ne.s32.totalorder %s43, %s45
    %p49 = scmp.eq.s32.totalorder %s9, 0
    %p50 = por %p48, %p49
    %p51 = scmp.ne.s32.totalorder %s43, %s45
    %p52 = scmp.eq.s32.totalorder %s14, 1
    %p53 = por %p51, %p52
    %p54 = scmp.ne.s32.totalorder %s45, %s46
    %p55 = scmp.eq.s32.totalorder %s14, 0
    %p56 = por %p54, %p55
    %p57 = scmp.ne.s32.totalorder %s45, %s46
    %p58 = scmp.eq.s32.totalorder %s15, 1
    %p59 = por %p57, %p58
    %p61 = scmp.ne.s32.totalorder %s46, %s60
    %p62 = scmp.eq.s32.totalorder %s15, 0
    %p63 = por %p61, %p62
    %s65 = sadd.s32 %s64, 1
    %p68 = scmp.eq.s32.totalorder %s9, 1
    %p69 = scmp.ne.s32.totalorder %s64, %s66
    %p70 = scmp.eq.s32.totalorder %s9, 0
    %p71 = por %p69, %p70
    %p72 = scmp.ne.s32.totalorder %s64, %s66
    %p73 = scmp.eq.s32.totalorder %s14, 1
    %p74 = por %p72, %p73
    %p75 = scmp.ne.s32.totalorder %s66, %s67
    %p76 = scmp.eq.s32.totalorder %s14, 0
    %p77 = por %p75, %p76
    %p78 = scmp.ne.s32.totalorder %s66, %s67
    %p79 = scmp.eq.s32.totalorder %s15, 1
    %p80 = por %p78, %p79
    %p82 = scmp.ne.s32.totalorder %s67, %s81
    %p83 = scmp.eq.s32.totalorder %s15, 0
    %p84 = por %p82, %p83
    %s85 = ssub.s32 %s9, %s16
    %p86 = scmp.eq.s32.totalorder %s85, 0
    %s88 = sadd.s32 %s87, 1
    %s89 = scalar_select %p86, %s87, %s88
    %p92 = pneg %p86
    %p93 = scmp.eq.s32.totalorder %s9, 1
    %p94 = por %p92, %p93
    %p95 = scmp.ne.s32.totalorder %s87, %s90
    %p96 = scmp.eq.s32.totalorder %s9, 0
    %p97 = por %p95, %p96
    %p98 = scmp.ne.s32.totalorder %s87, %s90
    %p99 = scmp.eq.s32.totalorder %s14, 1
    %p100 = por %p98, %p99
    %p101 = scmp.ne.s32.totalorder %s90, %s91
    %p102 = scmp.eq.s32.totalorder %s14, 0
    %p103 = por %p101, %p102
    %p104 = scmp.ne.s32.totalorder %s90, %s91
    %p105 = scmp.eq.s32.totalorder %s15, 1
    %p106 = por %p104, %p105
    %p108 = scmp.ne.s32.totalorder %s91, %s107
    %p109 = scmp.eq.s32.totalorder %s15, 0
    %p110 = por %p108, %p109
    %p111 = scmp.le.s32.totalorder 1, %s9
    %p112 = scmp.lt.s32.totalorder %s9, 3
    %p113 = pnand %p111, %p112
    %p114 = pneg %p113
    // Predicated region
    $region9: #{tpu_custom_call.1} parent=5 // pred_check
      _
    $region10: #{tpu_custom_call.1} parent=5 // pred_check_branch
      %116 = sbr.rel (%p113) target = $region12
    $region11: #{tpu_custom_call.1} parent=5 // pred_region
      %s117 = ssub.s32 %s9, 1
      // Predicated region
      $region13: #{tpu_custom_call.1} parent=11 // pred_check
        %p118 = pneg %p56
      $region14: #{tpu_custom_call.1} parent=11 // pred_check_branch
        %120 = sbr.rel (%p118) target = $region16
      $region15: #{tpu_custom_call.1} parent=11 // pred_region
        _
      $region16: #{tpu_custom_call.1} parent=11 // pred_fallthru
        _
      // Predicated region
      $region17: #{tpu_custom_call.1} parent=11 // pred_check
        %p121 = pneg %p77
      $region18: #{tpu_custom_call.1} parent=11 // pred_check_branch
        %123 = sbr.rel (%p121) target = $region20
      $region19: #{tpu_custom_call.1} parent=11 // pred_region
        _
      $region20: #{tpu_custom_call.1} parent=11 // pred_fallthru
        _
    $region12: #{tpu_custom_call.1} parent=5 // pred_fallthru
      _
    %p124 = scmp.lt.s32.totalorder %s9, 2
    // Predicated region
    $region21: #{tpu_custom_call.1} parent=5 // pred_check
      %p125 = pneg %p124
    $region22: #{tpu_custom_call.1} parent=5 // pred_check_branch
      %127 = sbr.rel (%p125) target = $region24
    $region23: #{tpu_custom_call.1} parent=5 // pred_region
      // Predicated region
      $region25: #{tpu_custom_call.1} parent=23 // pred_check
        %p128 = pneg %p29
      $region26: #{tpu_custom_call.1} parent=23 // pred_check_branch
        %130 = sbr.rel (%p128) target = $region28
      $region27: #{tpu_custom_call.1} parent=23 // pred_region
        %s131 = smul.u32 8, %s9
        %p132 = scmp.lt.s32.totalorder %s131, 15
        %s133 = scalar_select %p132, %s131, 15
        %s134 = smul.addr %s133, 8
        %s135 = scalar_lea.vmem %s0, %s134
        %s136 = smul.u32 8, %s9
      $region28: #{tpu_custom_call.1} parent=23 // pred_fallthru
        _
    $region24: #{tpu_custom_call.1} parent=5 // pred_fallthru
      _
    %p137 = scmp.le.s32.totalorder 1, %s9
    %p138 = scmp.lt.s32.totalorder %s9, 3
    %p139 = pnand %p137, %p138
    %p140 = pneg %p139
    // Predicated region
    $region29: #{tpu_custom_call.1} parent=5 // pred_check
      _
    $region30: #{tpu_custom_call.1} parent=5 // pred_check_branch
      %142 = sbr.rel (%p139) target = $region32
    $region31: #{tpu_custom_call.1} parent=5 // pred_region
      %s143 = ssub.s32 %s9, 1
      %s144 = smul.u32 8, %s14
      %p145 = scmp.lt.s32.totalorder %s144, 15
      %s146 = scalar_select %p145, %s144, 15
      %s147 = smul.addr %s146, 8
      %s148 = scalar_lea.vmem %s0, %s147
      %p149 = pneg %p35
      %p150 = pneg %p32
      %p151 = pneg %p56
      %p152 = pneg %p53
      %p153 = pneg %p77
      %p154 = pneg %p74
      %p155 = pneg %p103
      %p156 = pneg %p100
      %s157 = smul.u32 8, %s14
      %p158 = scmp.lt.s32.totalorder %s157, 15
      %s159 = scalar_select %p158, %s157, 15
      %s160 = smul.addr %s159, 2
      %s161 = smul.addr %s160, 8
      %s162 = scalar_lea.vmem %s3, %s161
      %s163 = smul.u32 8, %s14
      %p164 = scmp.lt.s32.totalorder %s163, 15
      %s165 = scalar_select %p164, %s163, 15
      %s166 = smul.addr %s165, 8
      %s167 = scalar_lea.vmem %s0, %s166
      %s168 = smul.u32 8, %s14
      %s169 = smul.u32 8, %s14
      %p170 = scmp.lt.s32.totalorder %s169, 15
      %s171 = scalar_select %p170, %s169, 15
      %s172 = smul.addr %s171, 2
      %s173 = smul.addr %s172, 8
      %s174 = scalar_lea.vmem %s3, %s173
      %s175 = smul.u32 8, %s14
      %v176 = vld [vmem:[%s167] sm:$0xff]
      %v177 = vld [vmem:[%s167 + $0x8] sm:$0xff]
      %v178 = vld [vmem:[%s167 + $0x10] sm:$0xff]
      %v179 = vld [vmem:[%s167 + $0x18] sm:$0xff]
      %v180 = vld [vmem:[%s167 + $0x20] sm:$0xff]
      %v181 = vld [vmem:[%s167 + $0x28] sm:$0xff]
      %v182 = vld [vmem:[%s167 + $0x30] sm:$0xff]
      %v183 = vld [vmem:[%s167 + $0x38] sm:$0xff]
      %v184 = vld [vmem:[%s2] sm:$0x1]
      %v185 = vld [vmem:[%s1] sm:$0xf]
      %v187 = vlaneseq
      %v188 = vshrl.u32 %v187, 7
      %v189 = vsub.s32 0, %v188
      %v190 = vrot.slane %v184, %v189
      %vm192 = vcmask 31744
      %v194 = vsel %vm192, %v176, 0
      %v197 = vsel %vm192, %v177, 0
      %v200 = vsel %vm192, %v178, 0
      %v203 = vsel %vm192, %v179, 0
      %v206 = vsel %vm192, %v180, 0
      %v209 = vsel %vm192, %v181, 0
      %v212 = vsel %vm192, %v182, 0
      %v215 = vsel %vm192, %v183, 0
      %vm217 = vcmask 1043456
      %v219 = vsel %vm217, %v185, 0
      %221 = vmatprep.subr.mxu0 0.0
      %222 = vmatpush1.msra.mxu0 %v219
      %223 = vmatprep.subr.mxu0 0.0
      %224 = vmatpush1.msra.mxu0 0.0
      %225 = vmatprep.subr.mxu0 0.0
      %226 = vmatpush1.msra.mxu0 0.0
      %227 = vmatprep.subr.mxu0 0.0
      %228 = vmatpush1.msra.mxu0 0.0
      %229 = vmatprep.subr.mxu0 0.0
      %230 = vmatpush1.msra.mxu0 0.0
      %231 = vmatprep.subr.mxu0 0.0
      %232 = vmatpush1.msra.mxu0 0.0
      %233 = vmatprep.subr.mxu0 0.0
      %234 = vmatpush1.msra.mxu0 0.0
      %235 = vmatprep.subr.mxu0 0.0
      %236 = vmatpush1.msra.mxu0 0.0
      %237 = vmatprep.subr.mxu0 0.0
      %238 = vmatpush1.msra.mxu0 0.0
      %239 = vmatprep.subr.mxu0 0.0
      %240 = vmatpush1.msra.mxu0 0.0
      %241 = vmatprep.subr.mxu0 0.0
      %242 = vmatpush1.msra.mxu0 0.0
      %243 = vmatprep.subr.mxu0 0.0
      %244 = vmatpush1.msra.mxu0 0.0
      %245 = vmatprep.subr.mxu0 0.0
      %246 = vmatpush1.msra.mxu0 0.0
      %247 = vmatprep.subr.mxu0 0.0
      %248 = vmatpush1.msra.mxu0 0.0
      %249 = vmatprep.subr.mxu0 0.0
      %250 = vmatpush1.msra.mxu0 0.0
      %251 = vmatprep.subr.mxu0 0.0
      %252 = vmatpush1.msra.mxu0 0.0
      %253 = vmatprep.subr.mxu0 0.0
      %254 = vmatpush1.msra.mxu0 0.0
      %255 = vmatprep.subr.mxu0 0.0
      %256 = vmatpush1.msra.mxu0 0.0
      %257 = vmatprep.subr.mxu0 0.0
      %258 = vmatpush1.msra.mxu0 0.0
      %259 = vmatprep.subr.mxu0 0.0
      %260 = vmatpush1.msra.mxu0 0.0
      %261 = vmatprep.subr.mxu0 0.0
      %262 = vmatpush1.msra.mxu0 0.0
      %263 = vmatprep.subr.mxu0 0.0
      %264 = vmatpush1.msra.mxu0 0.0
      %265 = vmatprep.subr.mxu0 0.0
      %266 = vmatpush1.msra.mxu0 0.0
      %267 = vmatprep.subr.mxu0 0.0
      %268 = vmatpush1.msra.mxu0 0.0
      %269 = vmatprep.subr.mxu0 0.0
      %270 = vmatpush1.msra.mxu0 0.0
      %271 = vmatprep.subr.mxu0 0.0
      %272 = vmatpush1.msra.mxu0 0.0
      %273 = vmatprep.subr.mxu0 0.0
      %274 = vmatpush1.msra.mxu0 0.0
      %275 = vmatprep.subr.mxu0 0.0
      %276 = vmatpush1.msra.mxu0 0.0
      %277 = vmatprep.subr.mxu0 0.0
      %278 = vmatpush1.msra.mxu0 0.0
      %279 = vmatprep.subr.mxu0 0.0
      %280 = vmatpush1.msra.mxu0 0.0
      %281 = vmatprep.subr.mxu0 0.0
      %282 = vmatpush1.msra.mxu0 0.0
      %283 = vmatprep.subr.mxu0 0.0
      %284 = vmatpush1.msra.mxu0 0.0
      %285 = vmatprep.mubr.f32.mxu0 0.0
      %286 = vmatmul.mubr.f32.gmra.mrb[0].mxu0 %v194
      %v287 = vpop.f32.mrb[0].mxu0
      %v288 = vadd.f32 %v190, %v287
      %v289 = vpop.f32.mrb[0].mxu0
      %290 = vmatprep.mubr.f32.mxu0 0.0
      %291 = vmatmul.mubr.f32.gmra.mrb[0].mxu0 %v197
      %v292 = vpop.f32.mrb[0].mxu0
      %v293 = vadd.f32 %v190, %v292
      %v294 = vpop.f32.mrb[0].mxu0
      %295 = vmatprep.mubr.f32.mxu0 0.0
      %296 = vmatmul.mubr.f32.gmra.mrb[0].mxu0 %v200
      %v297 = vpop.f32.mrb[0].mxu0
      %v298 = vadd.f32 %v190, %v297
      %v299 = vpop.f32.mrb[0].mxu0
      %300 = vmatprep.mubr.f32.mxu0 0.0
      %301 = vmatmul.mubr.f32.gmra.mrb[0].mxu0 %v203
      %v302 = vpop.f32.mrb[0].mxu0
      %v303 = vadd.f32 %v190, %v302
      %v304 = vpop.f32.mrb[0].mxu0
      %305 = vmatprep.mubr.f32.mxu0 0.0
      %306 = vmatmul.mubr.f32.gmra.mrb[0].mxu0 %v206
      %v307 = vpop.f32.mrb[0].mxu0
      %v308 = vadd.f32 %v190, %v307
      %v309 = vpop.f32.mrb[0].mxu0
      %310 = vmatprep.mubr.f32.mxu0 0.0
      %311 = vmatmul.mubr.f32.gmra.mrb[0].mxu0 %v209
      %v312 = vpop.f32.mrb[0].mxu0
      %v313 = vadd.f32 %v190, %v312
      %v314 = vpop.f32.mrb[0].mxu0
      %315 = vmatprep.mubr.f32.mxu0 0.0
      %316 = vmatmul.mubr.f32.gmra.mrb[0].mxu0 %v212
      %v317 = vpop.f32.mrb[0].mxu0
      %v318 = vadd.f32 %v190, %v317
      %v319 = vpop.f32.mrb[0].mxu0
      %320 = vmatprep.mubr.f32.mxu0 0.0
      %321 = vmatmul.mubr.f32.gmra.mrb[0].mxu0 %v215
      %v322 = vpop.f32.mrb[0].mxu0
      %v323 = vadd.f32 %v190, %v322
      %v324 = vpop.f32.mrb[0].mxu0
      %325 = vdwg.mxu0
      %vm326 = vcmask 64512
      %327 = vst.msk [vmem:[%s174] sm:$0xff] %vm326, %v288
      %328 = vst.msk [vmem:[%s174 + $0x10] sm:$0xff] %vm326, %v293
      %329 = vst.msk [vmem:[%s174 + $0x20] sm:$0xff] %vm326, %v298
      %330 = vst.msk [vmem:[%s174 + $0x30] sm:$0xff] %vm326, %v303
      %331 = vst.msk [vmem:[%s174 + $0x40] sm:$0xff] %vm326, %v308
      %332 = vst.msk [vmem:[%s174 + $0x50] sm:$0xff] %vm326, %v313
      %333 = vst.msk [vmem:[%s174 + $0x60] sm:$0xff] %vm326, %v318
      %334 = vst.msk [vmem:[%s174 + $0x70] sm:$0xff] %vm326, %v323
      %s335 = scalar_lea.vmem %s1, 4
      %v336 = vld [vmem:[%s335] sm:$0xf]
      %v338 = vsel %vm217, %v336, 0
      %340 = vmatprep.subr.mxu0 0.0
      %341 = vmatpush1.msra.mxu0 %v338
      %342 = vmatprep.subr.mxu0 0.0
      %343 = vmatpush1.msra.mxu0 0.0
      %344 = vmatprep.subr.mxu0 0.0
      %345 = vmatpush1.msra.mxu0 0.0
      %346 = vmatprep.subr.mxu0 0.0
      %347 = vmatpush1.msra.mxu0 0.0
      %348 = vmatprep.subr.mxu0 0.0
      %349 = vmatpush1.msra.mxu0 0.0
      %350 = vmatprep.subr.mxu0 0.0
      %351 = vmatpush1.msra.mxu0 0.0
      %352 = vmatprep.subr.mxu0 0.0
      %353 = vmatpush1.msra.mxu0 0.0
      %354 = vmatprep.subr.mxu0 0.0
      %355 = vmatpush1.msra.mxu0 0.0
      %356 = vmatprep.subr.mxu0 0.0
      %357 = vmatpush1.msra.mxu0 0.0
      %358 = vmatprep.subr.mxu0 0.0
      %359 = vmatpush1.msra.mxu0 0.0
      %360 = vmatprep.subr.mxu0 0.0
      %361 = vmatpush1.msra.mxu0 0.0
      %362 = vmatprep.subr.mxu0 0.0
      %363 = vmatpush1.msra.mxu0 0.0
      %364 = vmatprep.subr.mxu0 0.0
      %365 = vmatpush1.msra.mxu0 0.0
      %366 = vmatprep.subr.mxu0 0.0
      %367 = vmatpush1.msra.mxu0 0.0
      %368 = vmatprep.subr.mxu0 0.0
      %369 = vmatpush1.msra.mxu0 0.0
      %370 = vmatprep.subr.mxu0 0.0
      %371 = vmatpush1.msra.mxu0 0.0
      %372 = vmatprep.subr.mxu0 0.0
      %373 = vmatpush1.msra.mxu0 0.0
      %374 = vmatprep.subr.mxu0 0.0
      %375 = vmatpush1.msra.mxu0 0.0
      %376 = vmatprep.subr.mxu0 0.0
      %377 = vmatpush1.msra.mxu0 0.0
      %378 = vmatprep.subr.mxu0 0.0
      %379 = vmatpush1.msra.mxu0 0.0
      %380 = vmatprep.subr.mxu0 0.0
      %381 = vmatpush1.msra.mxu0 0.0
      %382 = vmatprep.subr.mxu0 0.0
      %383 = vmatpush1.msra.mxu0 0.0
      %384 = vmatprep.subr.mxu0 0.0
      %385 = vmatpush1.msra.mxu0 0.0
      %386 = vmatprep.subr.mxu0 0.0
      %387 = vmatpush1.msra.mxu0 0.0
      %388 = vmatprep.subr.mxu0 0.0
      %389 = vmatpush1.msra.mxu0 0.0
      %390 = vmatprep.subr.mxu0 0.0
      %391 = vmatpush1.msra.mxu0 0.0
      %392 = vmatprep.subr.mxu0 0.0
      %393 = vmatpush1.msra.mxu0 0.0
      %394 = vmatprep.subr.mxu0 0.0
      %395 = vmatpush1.msra.mxu0 0.0
      %396 = vmatprep.subr.mxu0 0.0
      %397 = vmatpush1.msra.mxu0 0.0
      %398 = vmatprep.subr.mxu0 0.0
      %399 = vmatpush1.msra.mxu0 0.0
      %400 = vmatprep.subr.mxu0 0.0
      %401 = vmatpush1.msra.mxu0 0.0
      %402 = vmatprep.subr.mxu0 0.0
      %403 = vmatpush1.msra.mxu0 0.0
      %404 = vmatprep.mubr.f32.mxu0 0.0
      %405 = vmatmul.mubr.f32.gmra.mrb[0].mxu0 %v194
      %v406 = vpop.f32.mrb[0].mxu0
      %v407 = vadd.f32 %v190, %v406
      %v408 = vpop.f32.mrb[0].mxu0
      %409 = vmatprep.mubr.f32.mxu0 0.0
      %410 = vmatmul.mubr.f32.gmra.mrb[0].mxu0 %v197
      %v411 = vpop.f32.mrb[0].mxu0
      %v412 = vadd.f32 %v190, %v411
      %v413 = vpop.f32.mrb[0].mxu0
      %414 = vmatprep.mubr.f32.mxu0 0.0
      %415 = vmatmul.mubr.f32.gmra.mrb[0].mxu0 %v200
      %v416 = vpop.f32.mrb[0].mxu0
      %v417 = vadd.f32 %v190, %v416
      %v418 = vpop.f32.mrb[0].mxu0
      %419 = vmatprep.mubr.f32.mxu0 0.0
      %420 = vmatmul.mubr.f32.gmra.mrb[0].mxu0 %v203
      %v421 = vpop.f32.mrb[0].mxu0
      %v422 = vadd.f32 %v190, %v421
      %v423 = vpop.f32.mrb[0].mxu0
      %424 = vmatprep.mubr.f32.mxu0 0.0
      %425 = vmatmul.mubr.f32.gmra.mrb[0].mxu0 %v206
      %v426 = vpop.f32.mrb[0].mxu0
      %v427 = vadd.f32 %v190, %v426
      %v428 = vpop.f32.mrb[0].mxu0
      %429 = vmatprep.mubr.f32.mxu0 0.0
      %430 = vmatmul.mubr.f32.gmra.mrb[0].mxu0 %v209
      %v431 = vpop.f32.mrb[0].mxu0
      %v432 = vadd.f32 %v190, %v431
      %v433 = vpop.f32.mrb[0].mxu0
      %434 = vmatprep.mubr.f32.mxu0 0.0
      %435 = vmatmul.mubr.f32.gmra.mrb[0].mxu0 %v212
      %v436 = vpop.f32.mrb[0].mxu0
      %v437 = vadd.f32 %v190, %v436
      %v438 = vpop.f32.mrb[0].mxu0
      %439 = vmatprep.mubr.f32.mxu0 0.0
      %440 = vmatmul.mubr.f32.gmra.mrb[0].mxu0 %v215
      %v441 = vpop.f32.mrb[0].mxu0
      %v442 = vadd.f32 %v190, %v441
      %v443 = vpop.f32.mrb[0].mxu0
      %444 = vdwg.mxu0
      %s445 = scalar_lea.vmem %s174, 8
      %446 = vst.msk [vmem:[%s445] sm:$0xff] %vm326, %v407
      %447 = vst.msk [vmem:[%s445 + $0x10] sm:$0xff] %vm326, %v412
      %448 = vst.msk [vmem:[%s445 + $0x20] sm:$0xff] %vm326, %v417
      %449 = vst.msk [vmem:[%s445 + $0x30] sm:$0xff] %vm326, %v422
      %450 = vst.msk [vmem:[%s445 + $0x40] sm:$0xff] %vm326, %v427
      %451 = vst.msk [vmem:[%s445 + $0x50] sm:$0xff] %vm326, %v432
      %452 = vst.msk [vmem:[%s445 + $0x60] sm:$0xff] %vm326, %v437
      %453 = vst.msk [vmem:[%s445 + $0x70] sm:$0xff] %vm326, %v442
      %s454 = smul.u32 8, %s14
      %p455 = scmp.lt.s32.totalorder %s454, 15
      %s456 = scalar_select %p455, %s454, 15
      %s457 = smul.addr %s456, 2
      %s458 = smul.addr %s457, 8
      %s459 = scalar_lea.vmem %s3, %s458
      // Predicated region
      $region33: #{tpu_custom_call.1} parent=31 // pred_check
        %p460 = pneg %p100
      $region34: #{tpu_custom_call.1} parent=31 // pred_check_branch
        %462 = sbr.rel (%p460) target = $region36
      $region35: #{tpu_custom_call.1} parent=31 // pred_region
        %s463 = smul.u32 8, %s14
      $region36: #{tpu_custom_call.1} parent=31 // pred_fallthru
        _
    $region32: #{tpu_custom_call.1} parent=5 // pred_fallthru
      _
    %p464 = scmp.le.s32.totalorder 2, %s9
    // Predicated region
    $region37: #{tpu_custom_call.1} parent=5 // pred_check
      %p465 = pneg %p464
    $region38: #{tpu_custom_call.1} parent=5 // pred_check_branch
      %467 = sbr.rel (%p465) target = $region40
    $region39: #{tpu_custom_call.1} parent=5 // pred_region
      %s468 = ssub.s32 %s9, 2
      // Predicated region
      $region41: #{tpu_custom_call.1} parent=39 // pred_check
        %p469 = pneg %p106
      $region42: #{tpu_custom_call.1} parent=39 // pred_check_branch
        %471 = sbr.rel (%p469) target = $region44
      $region43: #{tpu_custom_call.1} parent=39 // pred_region
        %s472 = smul.u32 8, %s15
        %p473 = scmp.lt.s32.totalorder %s472, 15
        %s474 = scalar_select %p473, %s472, 15
        %s475 = smul.addr %s474, 2
        %s476 = smul.addr %s475, 8
        %s477 = scalar_lea.vmem %s3, %s476
      $region44: #{tpu_custom_call.1} parent=39 // pred_fallthru
        _
    $region40: #{tpu_custom_call.1} parent=5 // pred_fallthru
      _
  $region6: #{tpu_custom_call.1} parent=0 // loop_footer
    %s13 = sadd.s32 1, %s9
  $region7: #{tpu_custom_call.1} parent=0 // loop_footer_branch
    %8 = sbr.rel target = $region3
  $region8: #{tpu_custom_call.1} parent=0 // loop_exit
    _

</llo_original>
